<compile_context>
chip_gen: v7x
topology: tpu7x:2x2x1
jax: 0.10.0
libtpu: 0.0.40
codegen_flags: <defaults>
</compile_context>

<pallas_src>
import functools

import jax
import jax.numpy as jnp
from jax import lax
from jax.experimental import pallas as pl
from jax.experimental.pallas import tpu as pltpu


def _attention_head_kernel(x_ref, wqkv_ref, o_ref, *, batch, seq):
    """Fused-QKV causal attention head, whole problem in one invocation.

    x_ref   : (batch*seq, C)   flattened (B, T) rows
    wqkv_ref: (C, 3*H)         [ k | q * C**0.5 | v ] concatenated along lanes
    o_ref   : (batch*seq, H)
    """
    x = x_ref[...]                                  # (B*T, C)
    head = o_ref.shape[-1]

    # One MXU matmul for all of Q, K, V over every (batch, position) row.
    qkv = jnp.dot(x, wqkv_ref[...], preferred_element_type=jnp.float32)  # (B*T, 3H)
    k = qkv[:, 0:head]
    q = qkv[:, head:2 * head]                       # score scale already folded in
    v = qkv[:, 2 * head:3 * head]

    # Static causal mask for one (T, T) score tile (shared across batches).
    row = lax.broadcasted_iota(jnp.int32, (seq, seq), 0)
    col = lax.broadcasted_iota(jnp.int32, (seq, seq), 1)
    causal = col <= row

    # Statically unrolled over the tiny batch: scores -> softmax -> P @ V.
    for b in range(batch):
        lo = b * seq                                # static, sublane-aligned (seq=8)
        qb = q[lo:lo + seq, :]                      # (T, H)
        kb = k[lo:lo + seq, :]
        vb = v[lo:lo + seq, :]

        # q @ k^T, contracting last dims directly (no materialized k.T).
        wei = lax.dot_general(
            qb, kb,
            dimension_numbers=(((1,), (1,)), ((), ())),
            preferred_element_type=jnp.float32,
        )                                           # (T, T)

        # masked_fill(-inf): diagonal is never masked, so a large finite
        # negative yields exp == 0 for masked entries (exact same softmax).
        wei = jnp.where(causal, wei, jnp.float32(-1e30))

        # Numerically stable softmax in f32. EUP approx reciprocal + one
        # Newton-Raphson step keeps ~f32 accuracy off the VALU critical path.
        m = jnp.max(wei, axis=-1, keepdims=True)
        e = jnp.exp(wei - m)
        s = jnp.sum(e, axis=-1, keepdims=True)
        r = pl.reciprocal(s, approx=True)
        r = r * (2.0 - s * r)                       # Newton step: ~f32 accurate
        p = e * r

        ob = jnp.dot(p, vb, preferred_element_type=jnp.float32)   # (T, H)
        o_ref[lo:lo + seq, :] = ob.astype(o_ref.dtype)


def attention_head(x, wk, wq, wv):
    """x: (B, T, C); wk/wq/wv: (C, H) pre-transposed Linear weights.

    Returns (B, T, H), matching AttentionHead.forward (including its
    `* C ** 0.5` score scaling).
    """
    B, T, C = x.shape
    H = wk.shape[1]

    # Fold the score scale into the query weights and fuse the three
    # projection matrices once, outside the kernel (jit-const-foldable).
    w_qkv = jnp.concatenate([wk, wq * (float(C) ** 0.5), wv], axis=1)  # (C, 3H)

    # (B, T, C) -> (B*T, C): free (bitcast) in the XLA wrapper; lets the
    # single kernel invocation do all projection work in one MXU matmul.
    x2d = x.reshape(B * T, C)

    kernel = functools.partial(_attention_head_kernel, batch=B, seq=T)
    out2d = pl.pallas_call(
        kernel,
        out_shape=jax.ShapeDtypeStruct((B * T, H), x.dtype),
        # grid=() — one invocation; total resident footprint is ~10 KB so
        # whole-array VMEM blocks are trivially within any chip's VMEM.
        in_specs=[
            pl.BlockSpec(memory_space=pltpu.MemorySpace.VMEM),
            pl.BlockSpec(memory_space=pltpu.MemorySpace.VMEM),
        ],
        out_specs=pl.BlockSpec(memory_space=pltpu.MemorySpace.VMEM),
    )(x2d, w_qkv)
    return out2d.reshape(B, T, H)


def reference(x, wk, wq, wv):
    B, T, C = x.shape
    k = x @ wk
    q = x @ wq
    v = x @ wv
    wei = jnp.einsum("btd,bsd->bts", q, k) * (float(C) ** 0.5)
    mask = jnp.tril(jnp.ones((T, T), dtype=bool))
    wei = jnp.where(mask, wei, -jnp.inf)
    wei = jax.nn.softmax(wei, axis=-1)
    return jnp.einsum("bts,bsh->bth", wei, v)


if __name__ == "__main__":
    # Config: block_size=8, n_embed=32, head_size=16
    B, T, C, H = 2, 8, 32, 16

    key = jax.random.PRNGKey(0)
    kx, kk, kq, kv = jax.random.split(key, 4)
    x = jax.random.normal(kx, (B, T, C), dtype=jnp.float32)
    # Deterministic "Linear(bias=False)" weights, stored as (in, out).
    wk = jax.random.normal(kk, (C, H), dtype=jnp.float32) * (C ** -0.5)
    wq = jax.random.normal(kq, (C, H), dtype=jnp.float32) * (C ** -0.5)
    wv = jax.random.normal(kv, (C, H), dtype=jnp.float32) * (C ** -0.5)

    out = jax.block_until_ready(attention_head(x, wk, wq, wv))
    ref = reference(x, wk, wq, wv)
    assert out.shape == (B, T, H)
    assert jnp.allclose(out, ref, atol=1e-4, rtol=1e-4)
    print("KERNEL_OK")
</pallas_src>

<mosaic_0001>
module attributes {stable_mosaic.version = 11 : i64} {
  func.func @_attention_head_kernel(%arg0: memref<16x32xf32, #tpu.memory_space<vmem>>, %arg1: memref<32x48xf32, #tpu.memory_space<vmem>>, %arg2: memref<16x16xf32, #tpu.memory_space<vmem>>) attributes {dimension_semantics = [], scalar_prefetch = 0 : i64, scratch_operands = 0 : i64, tpu.core_type = #tpu.core_type<tc>} {
    %c0 = arith.constant 0 : index
    %c0_0 = arith.constant 0 : index
    %0 = vector.load %arg0[%c0, %c0_0] : memref<16x32xf32, #tpu.memory_space<vmem>>, vector<16x32xf32>
    %c0_1 = arith.constant 0 : index
    %c0_2 = arith.constant 0 : index
    %1 = vector.load %arg1[%c0_1, %c0_2] : memref<32x48xf32, #tpu.memory_space<vmem>>, vector<32x48xf32>
    %cst = arith.constant dense<0.000000e+00> : vector<16x48xf32>
    %2 = tpu.matmul %0, %1, %cst {dimension_numbers = #tpu.dot_dimension_numbers<[1], [0], [0], [1], [0, 0, 1, 1], [], []>} : vector<16x32xf32>, vector<32x48xf32>, vector<16x48xf32> -> vector<16x48xf32>
    %3 = vector.extract_strided_slice %2 {offsets = [0, 0], sizes = [16, 16], strides = [1, 1]} : vector<16x48xf32> to vector<16x16xf32>
    %4 = vector.extract_strided_slice %2 {offsets = [0, 16], sizes = [16, 16], strides = [1, 1]} : vector<16x48xf32> to vector<16x16xf32>
    %5 = vector.extract_strided_slice %2 {offsets = [0, 32], sizes = [16, 16], strides = [1, 1]} : vector<16x48xf32> to vector<16x16xf32>
    %6 = tpu.iota {dimensions = array<i32: 0>} : vector<8x8xi32>
    %7 = tpu.iota {dimensions = array<i32: 1>} : vector<8x8xi32>
    %8 = arith.cmpi sle, %7, %6 : vector<8x8xi32>
    %9 = vector.extract_strided_slice %4 {offsets = [0, 0], sizes = [8, 16], strides = [1, 1]} : vector<16x16xf32> to vector<8x16xf32>
    %10 = vector.extract_strided_slice %3 {offsets = [0, 0], sizes = [8, 16], strides = [1, 1]} : vector<16x16xf32> to vector<8x16xf32>
    %11 = vector.extract_strided_slice %5 {offsets = [0, 0], sizes = [8, 16], strides = [1, 1]} : vector<16x16xf32> to vector<8x16xf32>
    %cst_3 = arith.constant dense<0.000000e+00> : vector<8x8xf32>
    %12 = tpu.matmul %9, %10, %cst_3 {dimension_numbers = #tpu.dot_dimension_numbers<[1], [1], [0], [0], [0, 0, 1, 0], [], []>} : vector<8x16xf32>, vector<8x16xf32>, vector<8x8xf32> -> vector<8x8xf32>
    %cst_4 = arith.constant -1.000000e+30 : f32
    %13 = vector.broadcast %cst_4 : f32 to vector<8x8xf32>
    %14 = arith.select %8, %12, %13 : vector<8x8xi1>, vector<8x8xf32>
    %cst_5 = arith.constant dense<0xFF800000> : vector<8xf32>
    %15 = vector.multi_reduction <maximumf>, %14, %cst_5 [1] : vector<8x8xf32> to vector<8xf32>
    %16 = vector.shape_cast %15 : vector<8xf32> to vector<8x1xf32>
    %17 = vector.broadcast %16 : vector<8x1xf32> to vector<8x8xf32>
    %18 = arith.subf %14, %17 : vector<8x8xf32>
    %19 = math.exp %18 : vector<8x8xf32>
    %cst_6 = arith.constant dense<0.000000e+00> : vector<8xf32>
    %20 = vector.multi_reduction <add>, %19, %cst_6 [1] : vector<8x8xf32> to vector<8xf32>
    %21 = vector.shape_cast %20 : vector<8xf32> to vector<8x1xf32>
    %22 = tpu.reciprocal %21 {approx = true} : vector<8x1xf32> -> vector<8x1xf32>
    %23 = arith.mulf %21, %22 : vector<8x1xf32>
    %cst_7 = arith.constant 2.000000e+00 : f32
    %24 = vector.broadcast %cst_7 : f32 to vector<8x1xf32>
    %25 = arith.subf %24, %23 : vector<8x1xf32>
    %26 = arith.mulf %22, %25 : vector<8x1xf32>
    %27 = vector.broadcast %26 : vector<8x1xf32> to vector<8x8xf32>
    %28 = arith.mulf %19, %27 : vector<8x8xf32>
    %cst_8 = arith.constant dense<0.000000e+00> : vector<8x16xf32>
    %29 = tpu.matmul %28, %11, %cst_8 {dimension_numbers = #tpu.dot_dimension_numbers<[1], [0], [0], [1], [0, 0, 1, 1], [], []>} : vector<8x8xf32>, vector<8x16xf32>, vector<8x16xf32> -> vector<8x16xf32>
    %c0_9 = arith.constant 0 : index
    %c0_10 = arith.constant 0 : index
    %30 = vector.load %arg2[%c0_9, %c0_10] : memref<16x16xf32, #tpu.memory_space<vmem>>, vector<8x16xf32>
    tpu.vector_store %arg2[%c0_9, %c0_10], %29 {strides = array<i32>} : memref<16x16xf32, #tpu.memory_space<vmem>>, vector<8x16xf32>,
    %31 = vector.extract_strided_slice %4 {offsets = [8, 0], sizes = [8, 16], strides = [1, 1]} : vector<16x16xf32> to vector<8x16xf32>
    %32 = vector.extract_strided_slice %3 {offsets = [8, 0], sizes = [8, 16], strides = [1, 1]} : vector<16x16xf32> to vector<8x16xf32>
    %33 = vector.extract_strided_slice %5 {offsets = [8, 0], sizes = [8, 16], strides = [1, 1]} : vector<16x16xf32> to vector<8x16xf32>
    %cst_11 = arith.constant dense<0.000000e+00> : vector<8x8xf32>
    %34 = tpu.matmul %31, %32, %cst_11 {dimension_numbers = #tpu.dot_dimension_numbers<[1], [1], [0], [0], [0, 0, 1, 0], [], []>} : vector<8x16xf32>, vector<8x16xf32>, vector<8x8xf32> -> vector<8x8xf32>
    %cst_12 = arith.constant -1.000000e+30 : f32
    %35 = vector.broadcast %cst_12 : f32 to vector<8x8xf32>
    %36 = arith.select %8, %34, %35 : vector<8x8xi1>, vector<8x8xf32>
    %cst_13 = arith.constant dense<0xFF800000> : vector<8xf32>
    %37 = vector.multi_reduction <maximumf>, %36, %cst_13 [1] : vector<8x8xf32> to vector<8xf32>
    %38 = vector.shape_cast %37 : vector<8xf32> to vector<8x1xf32>
    %39 = vector.broadcast %38 : vector<8x1xf32> to vector<8x8xf32>
    %40 = arith.subf %36, %39 : vector<8x8xf32>
    %41 = math.exp %40 : vector<8x8xf32>
    %cst_14 = arith.constant dense<0.000000e+00> : vector<8xf32>
    %42 = vector.multi_reduction <add>, %41, %cst_14 [1] : vector<8x8xf32> to vector<8xf32>
    %43 = vector.shape_cast %42 : vector<8xf32> to vector<8x1xf32>
    %44 = tpu.reciprocal %43 {approx = true} : vector<8x1xf32> -> vector<8x1xf32>
    %45 = arith.mulf %43, %44 : vector<8x1xf32>
    %cst_15 = arith.constant 2.000000e+00 : f32
    %46 = vector.broadcast %cst_15 : f32 to vector<8x1xf32>
    %47 = arith.subf %46, %45 : vector<8x1xf32>
    %48 = arith.mulf %44, %47 : vector<8x1xf32>
    %49 = vector.broadcast %48 : vector<8x1xf32> to vector<8x8xf32>
    %50 = arith.mulf %41, %49 : vector<8x8xf32>
    %cst_16 = arith.constant dense<0.000000e+00> : vector<8x16xf32>
    %51 = tpu.matmul %50, %33, %cst_16 {dimension_numbers = #tpu.dot_dimension_numbers<[1], [0], [0], [1], [0, 0, 1, 1], [], []>} : vector<8x8xf32>, vector<8x16xf32>, vector<8x16xf32> -> vector<8x16xf32>
    %c8 = arith.constant 8 : index
    %c0_17 = arith.constant 0 : index
    %52 = vector.load %arg2[%c8, %c0_17] : memref<16x16xf32, #tpu.memory_space<vmem>>, vector<8x16xf32>
    tpu.vector_store %arg2[%c8, %c0_17], %51 {strides = array<i32>} : memref<16x16xf32, #tpu.memory_space<vmem>>, vector<8x16xf32>,
    return
  }
}

</mosaic_0001>

<llo_original>
// kernel: tpu_custom_call.1
$region0: #{tpu_custom_call.1}
  #allocation0 [shape = 'u32[]', space=smem, size = 0x4, offset = 0x4, fixed_abs, tag = 'smem constant byte address 0x4 - core index']
  #allocation1 [shape = 'u32[144,128]{1,0:T(1,128)}', space=vmem, size = 0x12000, scoped, tag = 'internal scratch']
  %s0 = inlined_call_operand.hbm [shape: f32[16,32], index: 0, kind: input, shape index: {}]
  %s1 = inlined_call_operand.hbm [shape: f32[32,48], index: 1, kind: input, shape index: {}]
  %s2 = inlined_call_operand.hbm [shape: f32[16,16], index: 2, kind: output, shape index: {}]
  %s3 = sld [smem:[#allocation0]]
  $region26: #{tpu_custom_call.1} parent=0
    _
  %s5 = ssub.s32 1, %s3
  %s6 = scalar_select 0, %s5, %s3
  $region1: #{tpu_custom_call.1} parent=0
    #allocation2 [shape = 'u8[8192]{0}', space=vmem, size = 0x2000, scoped, tag = 'input window, operand 0, single buffered']
    #allocation3 [shape = 's32[1]{0}', space=sflag, size = 0x4, scoped, tag = 'scoped memory for tpu_custom_call.1']
    #allocation4 [shape = 's32[1]{0}', space=sflag, size = 0x4, scoped, tag = 'scoped memory for tpu_custom_call.1']
    #allocation5 [shape = 'u8[16384]{0}', space=vmem, size = 0x4000, scoped, tag = 'input window, operand 1, single buffered']
    #allocation6 [shape = 's32[1]{0}', space=sflag, size = 0x4, scoped, tag = 'scoped memory for tpu_custom_call.1']
    #allocation7 [shape = 'u8[8192]{0}', space=vmem, size = 0x2000, scoped, tag = 'output window, operand 0, single buffered']
    %7 = vsyncpa [#allocation3], 0
    %8 = vsyncpa [#allocation6], 0
    %9 = vsyncpa [#allocation4], 0
    // Predicated region
    $region2: #{tpu_custom_call.1} parent=1 // pred_check
      _
    $region3: #{tpu_custom_call.1} parent=1 // pred_check_branch
      %11 = sbr.rel (0) target = $region5
    $region4: #{tpu_custom_call.1} parent=1 // pred_region
      %s13 = ssub.s32 256, 256
      %14 = vsyncadd [#allocation3], %s13
      %s15 = sshll.u32 [#allocation2], 4
      %s16 = int_to_ptr.vmem [resolvable:$true] %s15
      %21 = dma.hbm_to_vmem [thread:$0]  %s0, 256, %s16, [#allocation3], 128, 128, 8
    $region5: #{tpu_custom_call.1} parent=1 // pred_fallthru
      _
    // Predicated region
    $region6: #{tpu_custom_call.1} parent=1 // pred_check
      _
    $region7: #{tpu_custom_call.1} parent=1 // pred_check_branch
      %23 = sbr.rel (0) target = $region9
    $region8: #{tpu_custom_call.1} parent=1 // pred_region
      %s25 = ssub.s32 512, 512
      %26 = vsyncadd [#allocation6], %s25
      %s27 = sshll.u32 [#allocation5], 4
      %s28 = int_to_ptr.vmem [resolvable:$true] %s27
      %33 = dma.hbm_to_vmem [thread:$0]  %s1, 512, %s28, [#allocation6], 128, 128, 8
    $region9: #{tpu_custom_call.1} parent=1 // pred_fallthru
      _
    // Predicated region
    $region10: #{tpu_custom_call.1} parent=1 // pred_check
      _
    $region11: #{tpu_custom_call.1} parent=1 // pred_check_branch
      %35 = sbr.rel (0) target = $region13
    $region12: #{tpu_custom_call.1} parent=1 // pred_region
      %36 = dma.done [#allocation3], 256
    $region13: #{tpu_custom_call.1} parent=1 // pred_fallthru
      _
    // Predicated region
    $region14: #{tpu_custom_call.1} parent=1 // pred_check
      _
    $region15: #{tpu_custom_call.1} parent=1 // pred_check_branch
      %38 = sbr.rel (0) target = $region17
    $region16: #{tpu_custom_call.1} parent=1 // pred_region
      %39 = dma.done [#allocation6], 512
    $region17: #{tpu_custom_call.1} parent=1 // pred_fallthru
      _
    %v40 = vld [vmem:[#allocation2] sm:$0xff]
    %v41 = vld [vmem:[#allocation2 + $0x8] sm:$0xff]
    %v42 = vld [vmem:[#allocation5] sm:$0xff]
    %v43 = vld [vmem:[#allocation5 + $0x8] sm:$0xff]
    %v44 = vld [vmem:[#allocation5 + $0x10] sm:$0xff]
    %v45 = vld [vmem:[#allocation5 + $0x18] sm:$0xff]
    %vm46 = vcmask 261120
    %v48 = vsel %vm46, %v40, 0
    %v51 = vsel %vm46, %v41, 0
    %53 = vmatprep.subr.mxu0 0.0
    %54 = vmatpush1.msra.mxu0 %v42
    %55 = vmatprep.subr.mxu0 0.0
    %56 = vmatpush1.msra.mxu0 %v43
    %57 = vmatprep.subr.mxu0 0.0
    %58 = vmatpush1.msra.mxu0 %v44
    %59 = vmatprep.subr.mxu0 0.0
    %60 = vmatpush1.msra.mxu0 %v45
    %61 = vmatprep.subr.mxu0 0.0
    %62 = vmatpush1.msra.mxu0 0.0
    %63 = vmatprep.subr.mxu0 0.0
    %64 = vmatpush1.msra.mxu0 0.0
    %65 = vmatprep.subr.mxu0 0.0
    %66 = vmatpush1.msra.mxu0 0.0
    %67 = vmatprep.subr.mxu0 0.0
    %68 = vmatpush1.msra.mxu0 0.0
    %69 = vmatprep.subr.mxu0 0.0
    %70 = vmatpush1.msra.mxu0 0.0
    %71 = vmatprep.subr.mxu0 0.0
    %72 = vmatpush1.msra.mxu0 0.0
    %73 = vmatprep.subr.mxu0 0.0
    %74 = vmatpush1.msra.mxu0 0.0
    %75 = vmatprep.subr.mxu0 0.0
    %76 = vmatpush1.msra.mxu0 0.0
    %77 = vmatprep.subr.mxu0 0.0
    %78 = vmatpush1.msra.mxu0 0.0
    %79 = vmatprep.subr.mxu0 0.0
    %80 = vmatpush1.msra.mxu0 0.0
    %81 = vmatprep.subr.mxu0 0.0
    %82 = vmatpush1.msra.mxu0 0.0
    %83 = vmatprep.subr.mxu0 0.0
    %84 = vmatpush1.msra.mxu0 0.0
    %85 = vmatprep.subr.mxu0 0.0
    %86 = vmatpush1.msra.mxu0 0.0
    %87 = vmatprep.subr.mxu0 0.0
    %88 = vmatpush1.msra.mxu0 0.0
    %89 = vmatprep.subr.mxu0 0.0
    %90 = vmatpush1.msra.mxu0 0.0
    %91 = vmatprep.subr.mxu0 0.0
    %92 = vmatpush1.msra.mxu0 0.0
    %93 = vmatprep.subr.mxu0 0.0
    %94 = vmatpush1.msra.mxu0 0.0
    %95 = vmatprep.subr.mxu0 0.0
    %96 = vmatpush1.msra.mxu0 0.0
    %97 = vmatprep.subr.mxu0 0.0
    %98 = vmatpush1.msra.mxu0 0.0
    %99 = vmatprep.subr.mxu0 0.0
    %100 = vmatpush1.msra.mxu0 0.0
    %101 = vmatprep.subr.mxu0 0.0
    %102 = vmatpush1.msra.mxu0 0.0
    %103 = vmatprep.subr.mxu0 0.0
    %104 = vmatpush1.msra.mxu0 0.0
    %105 = vmatprep.subr.mxu0 0.0
    %106 = vmatpush1.msra.mxu0 0.0
    %107 = vmatprep.subr.mxu0 0.0
    %108 = vmatpush1.msra.mxu0 0.0
    %109 = vmatprep.subr.mxu0 0.0
    %110 = vmatpush1.msra.mxu0 0.0
    %111 = vmatprep.subr.mxu0 0.0
    %112 = vmatpush1.msra.mxu0 0.0
    %113 = vmatprep.subr.mxu0 0.0
    %114 = vmatpush1.msra.mxu0 0.0
    %115 = vmatprep.subr.mxu0 0.0
    %116 = vmatpush1.msra.mxu0 0.0
    %117 = vmatprep.mubr.f32.mxu0 0.0
    %118 = vmatmul.mubr.f32.gmra.mrb[0].mxu0 %v48
    %v119 = vpop.f32.mrb[0].mxu0
    %v120 = vadd.f32 0.0, %v119
    %v121 = vpop.f32.mrb[0].mxu0
    %122 = vmatprep.mubr.f32.mxu0 0.0
    %123 = vmatmul.mubr.f32.gmra.mrb[0].mxu0 %v51
    %v124 = vpop.f32.mrb[0].mxu0
    %v125 = vadd.f32 0.0, %v124
    %v126 = vpop.f32.mrb[0].mxu0
    %127 = vdwg.mxu0
    %v128 = vlaneseq
    %v129 = vshrl.u32 %v128, 7
    %v130 = vlaneseq
    %v131 = vand.u32 %v130, 127
    %vm132 = vcmp.le.s32.totalorder %v131, %v129
    %134 = vrot.lane.b32.xlu0 %v120, 112
    %v135 = vpop.permute.xlu0 %134
    %vm136 = vcmask 130048
    %v137 = vsel %vm136, %v135, 0
    %v139 = vsel %vm136, %v120, 0
    %141 = vmatprep.subr.mxu0 0.0
    %142 = vmatpush1.xpose.msra.mxu0 %v139
    %143 = vmatprep.subr.mxu0 0.0
    %144 = vmatpush1.xpose.msra.mxu0 0.0
    %145 = vmatprep.subr.mxu0 0.0
    %146 = vmatpush1.xpose.msra.mxu0 0.0
    %147 = vmatprep.subr.mxu0 0.0
    %148 = vmatpush1.xpose.msra.mxu0 0.0
    %149 = vmatprep.subr.mxu0 0.0
    %150 = vmatpush1.xpose.msra.mxu0 0.0
    %151 = vmatprep.subr.mxu0 0.0
    %152 = vmatpush1.xpose.msra.mxu0 0.0
    %153 = vmatprep.subr.mxu0 0.0
    %154 = vmatpush1.xpose.msra.mxu0 0.0
    %155 = vmatprep.subr.mxu0 0.0
    %156 = vmatpush1.xpose.msra.mxu0 0.0
    %157 = vmatprep.subr.mxu0 0.0
    %158 = vmatpush1.xpose.msra.mxu0 0.0
    %159 = vmatprep.subr.mxu0 0.0
    %160 = vmatpush1.xpose.msra.mxu0 0.0
    %161 = vmatprep.subr.mxu0 0.0
    %162 = vmatpush1.xpose.msra.mxu0 0.0
    %163 = vmatprep.subr.mxu0 0.0
    %164 = vmatpush1.xpose.msra.mxu0 0.0
    %165 = vmatprep.subr.mxu0 0.0
    %166 = vmatpush1.xpose.msra.mxu0 0.0
    %167 = vmatprep.subr.mxu0 0.0
    %168 = vmatpush1.xpose.msra.mxu0 0.0
    %169 = vmatprep.subr.mxu0 0.0
    %170 = vmatpush1.xpose.msra.mxu0 0.0
    %171 = vmatprep.subr.mxu0 0.0
    %172 = vmatpush1.xpose.msra.mxu0 0.0
    %173 = vmatprep.subr.mxu0 0.0
    %174 = vmatpush1.xpose.msra.mxu0 0.0
    %175 = vmatprep.subr.mxu0 0.0
    %176 = vmatpush1.xpose.msra.mxu0 0.0
    %177 = vmatprep.subr.mxu0 0.0
    %178 = vmatpush1.xpose.msra.mxu0 0.0
    %179 = vmatprep.subr.mxu0 0.0
    %180 = vmatpush1.xpose.msra.mxu0 0.0
    %181 = vmatprep.subr.mxu0 0.0
    %182 = vmatpush1.xpose.msra.mxu0 0.0
    %183 = vmatprep.subr.mxu0 0.0
    %184 = vmatpush1.xpose.msra.mxu0 0.0
    %185 = vmatprep.subr.mxu0 0.0
    %186 = vmatpush1.xpose.msra.mxu0 0.0
    %187 = vmatprep.subr.mxu0 0.0
    %188 = vmatpush1.xpose.msra.mxu0 0.0
    %189 = vmatprep.subr.mxu0 0.0
    %190 = vmatpush1.xpose.msra.mxu0 0.0
    %191 = vmatprep.subr.mxu0 0.0
    %192 = vmatpush1.xpose.msra.mxu0 0.0
    %193 = vmatprep.subr.mxu0 0.0
    %194 = vmatpush1.xpose.msra.mxu0 0.0
    %195 = vmatprep.subr.mxu0 0.0
    %196 = vmatpush1.xpose.msra.mxu0 0.0
    %197 = vmatprep.subr.mxu0 0.0
    %198 = vmatpush1.xpose.msra.mxu0 0.0
    %199 = vmatprep.subr.mxu0 0.0
    %200 = vmatpush1.xpose.msra.mxu0 0.0
    %201 = vmatprep.subr.mxu0 0.0
    %202 = vmatpush1.xpose.msra.mxu0 0.0
    %203 = vmatprep.subr.mxu0 0.0
    %204 = vmatpush1.xpose.msra.mxu0 0.0
    %205 = vmatprep.mubr.f32.mxu0 0.0
    %206 = vmatmul.mubr.f32.gmra.mrb[0].mxu0 %v137
    %v207 = vpop.f32.mrb[0].mxu0
    %v208 = vadd.f32 0.0, %v207
    %v209 = vpop.f32.mrb[0].mxu0
    %210 = vdwg.mxu0
    %v211 = vsel %vm132, %v208, -1e+30
    %vm212 = vcmask 64512
    %v213 = vsel %vm212, %v211, -inf
    %214 = vmax.xlane.f32.xlu0 %v213
    %v215 = vpop.xlane.xlu0 %214
    %v216 = vsub.f32 %v211, %v215
    %v217 = vmul.f32 %v216, 1.442695
    %v218 = vpow.pop %v217
    %v219 = vsel %vm212, %v218, 0.0
    %220 = vadd.xlane.f32.xlu0 %v219
    %v221 = vpop.xlane.xlu0 %220
    %v222 = vrcp.pop %v221
    %v223 = vmul.f32 %v221, %v222
    %v224 = vsub.f32 2.0, %v223
    %v225 = vmul.f32 %v222, %v224
    %v226 = vmul.f32 %v218, %v225
    %227 = vrot.lane.b32.xlu0 %v120, 96
    %v228 = vpop.permute.xlu0 %227
    %v231 = vsel %vm212, %v226, 0
    %233 = vmatprep.subr.mxu0 0.0
    %234 = vmatpush1.msra.mxu0 %v228
    %235 = vmatprep.subr.mxu0 0.0
    %236 = vmatpush1.msra.mxu0 0.0
    %237 = vmatprep.subr.mxu0 0.0
    %238 = vmatpush1.msra.mxu0 0.0
    %239 = vmatprep.subr.mxu0 0.0
    %240 = vmatpush1.msra.mxu0 0.0
    %241 = vmatprep.subr.mxu0 0.0
    %242 = vmatpush1.msra.mxu0 0.0
    %243 = vmatprep.subr.mxu0 0.0
    %244 = vmatpush1.msra.mxu0 0.0
    %245 = vmatprep.subr.mxu0 0.0
    %246 = vmatpush1.msra.mxu0 0.0
    %247 = vmatprep.subr.mxu0 0.0
    %248 = vmatpush1.msra.mxu0 0.0
    %249 = vmatprep.subr.mxu0 0.0
    %250 = vmatpush1.msra.mxu0 0.0
    %251 = vmatprep.subr.mxu0 0.0
    %252 = vmatpush1.msra.mxu0 0.0
    %253 = vmatprep.subr.mxu0 0.0
    %254 = vmatpush1.msra.mxu0 0.0
    %255 = vmatprep.subr.mxu0 0.0
    %256 = vmatpush1.msra.mxu0 0.0
    %257 = vmatprep.subr.mxu0 0.0
    %258 = vmatpush1.msra.mxu0 0.0
    %259 = vmatprep.subr.mxu0 0.0
    %260 = vmatpush1.msra.mxu0 0.0
    %261 = vmatprep.subr.mxu0 0.0
    %262 = vmatpush1.msra.mxu0 0.0
    %263 = vmatprep.subr.mxu0 0.0
    %264 = vmatpush1.msra.mxu0 0.0
    %265 = vmatprep.subr.mxu0 0.0
    %266 = vmatpush1.msra.mxu0 0.0
    %267 = vmatprep.subr.mxu0 0.0
    %268 = vmatpush1.msra.mxu0 0.0
    %269 = vmatprep.subr.mxu0 0.0
    %270 = vmatpush1.msra.mxu0 0.0
    %271 = vmatprep.subr.mxu0 0.0
    %272 = vmatpush1.msra.mxu0 0.0
    %273 = vmatprep.subr.mxu0 0.0
    %274 = vmatpush1.msra.mxu0 0.0
    %275 = vmatprep.subr.mxu0 0.0
    %276 = vmatpush1.msra.mxu0 0.0
    %277 = vmatprep.subr.mxu0 0.0
    %278 = vmatpush1.msra.mxu0 0.0
    %279 = vmatprep.subr.mxu0 0.0
    %280 = vmatpush1.msra.mxu0 0.0
    %281 = vmatprep.subr.mxu0 0.0
    %282 = vmatpush1.msra.mxu0 0.0
    %283 = vmatprep.subr.mxu0 0.0
    %284 = vmatpush1.msra.mxu0 0.0
    %285 = vmatprep.subr.mxu0 0.0
    %286 = vmatpush1.msra.mxu0 0.0
    %287 = vmatprep.subr.mxu0 0.0
    %288 = vmatpush1.msra.mxu0 0.0
    %289 = vmatprep.subr.mxu0 0.0
    %290 = vmatpush1.msra.mxu0 0.0
    %291 = vmatprep.subr.mxu0 0.0
    %292 = vmatpush1.msra.mxu0 0.0
    %293 = vmatprep.subr.mxu0 0.0
    %294 = vmatpush1.msra.mxu0 0.0
    %295 = vmatprep.subr.mxu0 0.0
    %296 = vmatpush1.msra.mxu0 0.0
    %297 = vmatprep.mubr.f32.mxu0 0.0
    %298 = vmatmul.mubr.f32.gmra.mrb[0].mxu0 %v231
    %v299 = vpop.f32.mrb[0].mxu0
    %v300 = vadd.f32 0.0, %v299
    %v301 = vpop.f32.mrb[0].mxu0
    %302 = vdwg.mxu0
    %303 = vst.msk [vmem:[#allocation7] sm:$0xff] %vm136, %v300
    %305 = vrot.lane.b32.xlu0 %v125, 112
    %v306 = vpop.permute.xlu0 %305
    %v307 = vsel %vm136, %v306, 0
    %v309 = vsel %vm136, %v125, 0
    %311 = vmatprep.subr.mxu0 0.0
    %312 = vmatpush1.xpose.msra.mxu0 %v309
    %313 = vmatprep.subr.mxu0 0.0
    %314 = vmatpush1.xpose.msra.mxu0 0.0
    %315 = vmatprep.subr.mxu0 0.0
    %316 = vmatpush1.xpose.msra.mxu0 0.0
    %317 = vmatprep.subr.mxu0 0.0
    %318 = vmatpush1.xpose.msra.mxu0 0.0
    %319 = vmatprep.subr.mxu0 0.0
    %320 = vmatpush1.xpose.msra.mxu0 0.0
    %321 = vmatprep.subr.mxu0 0.0
    %322 = vmatpush1.xpose.msra.mxu0 0.0
    %323 = vmatprep.subr.mxu0 0.0
    %324 = vmatpush1.xpose.msra.mxu0 0.0
    %325 = vmatprep.subr.mxu0 0.0
    %326 = vmatpush1.xpose.msra.mxu0 0.0
    %327 = vmatprep.subr.mxu0 0.0
    %328 = vmatpush1.xpose.msra.mxu0 0.0
    %329 = vmatprep.subr.mxu0 0.0
    %330 = vmatpush1.xpose.msra.mxu0 0.0
    %331 = vmatprep.subr.mxu0 0.0
    %332 = vmatpush1.xpose.msra.mxu0 0.0
    %333 = vmatprep.subr.mxu0 0.0
    %334 = vmatpush1.xpose.msra.mxu0 0.0
    %335 = vmatprep.subr.mxu0 0.0
    %336 = vmatpush1.xpose.msra.mxu0 0.0
    %337 = vmatprep.subr.mxu0 0.0
    %338 = vmatpush1.xpose.msra.mxu0 0.0
    %339 = vmatprep.subr.mxu0 0.0
    %340 = vmatpush1.xpose.msra.mxu0 0.0
    %341 = vmatprep.subr.mxu0 0.0
    %342 = vmatpush1.xpose.msra.mxu0 0.0
    %343 = vmatprep.subr.mxu0 0.0
    %344 = vmatpush1.xpose.msra.mxu0 0.0
    %345 = vmatprep.subr.mxu0 0.0
    %346 = vmatpush1.xpose.msra.mxu0 0.0
    %347 = vmatprep.subr.mxu0 0.0
    %348 = vmatpush1.xpose.msra.mxu0 0.0
    %349 = vmatprep.subr.mxu0 0.0
    %350 = vmatpush1.xpose.msra.mxu0 0.0
    %351 = vmatprep.subr.mxu0 0.0
    %352 = vmatpush1.xpose.msra.mxu0 0.0
    %353 = vmatprep.subr.mxu0 0.0
    %354 = vmatpush1.xpose.msra.mxu0 0.0
    %355 = vmatprep.subr.mxu0 0.0
    %356 = vmatpush1.xpose.msra.mxu0 0.0
    %357 = vmatprep.subr.mxu0 0.0
    %358 = vmatpush1.xpose.msra.mxu0 0.0
    %359 = vmatprep.subr.mxu0 0.0
    %360 = vmatpush1.xpose.msra.mxu0 0.0
    %361 = vmatprep.subr.mxu0 0.0
    %362 = vmatpush1.xpose.msra.mxu0 0.0
    %363 = vmatprep.subr.mxu0 0.0
    %364 = vmatpush1.xpose.msra.mxu0 0.0
    %365 = vmatprep.subr.mxu0 0.0
    %366 = vmatpush1.xpose.msra.mxu0 0.0
    %367 = vmatprep.subr.mxu0 0.0
    %368 = vmatpush1.xpose.msra.mxu0 0.0
    %369 = vmatprep.subr.mxu0 0.0
    %370 = vmatpush1.xpose.msra.mxu0 0.0
    %371 = vmatprep.subr.mxu0 0.0
    %372 = vmatpush1.xpose.msra.mxu0 0.0
    %373 = vmatprep.subr.mxu0 0.0
    %374 = vmatpush1.xpose.msra.mxu0 0.0
    %375 = vmatprep.mubr.f32.mxu0 0.0
    %376 = vmatmul.mubr.f32.gmra.mrb[0].mxu0 %v307
    %v377 = vpop.f32.mrb[0].mxu0
    %v378 = vadd.f32 0.0, %v377
    %v379 = vpop.f32.mrb[0].mxu0
    %380 = vdwg.mxu0
    %v381 = vsel %vm132, %v378, -1e+30
    %v382 = vsel %vm212, %v381, -inf
    %383 = vmax.xlane.f32.xlu0 %v382
    %v384 = vpop.xlane.xlu0 %383
    %v385 = vsub.f32 %v381, %v384
    %v386 = vmul.f32 %v385, 1.442695
    %v387 = vpow.pop %v386
    %v388 = vsel %vm212, %v387, 0.0
    %389 = vadd.xlane.f32.xlu0 %v388
    %v390 = vpop.xlane.xlu0 %389
    %v391 = vrcp.pop %v390
    %v392 = vmul.f32 %v390, %v391
    %v393 = vsub.f32 2.0, %v392
    %v394 = vmul.f32 %v391, %v393
    %v395 = vmul.f32 %v387, %v394
    %396 = vrot.lane.b32.xlu0 %v125, 96
    %v397 = vpop.permute.xlu0 %396
    %v400 = vsel %vm212, %v395, 0
    %402 = vmatprep.subr.mxu0 0.0
    %403 = vmatpush1.msra.mxu0 %v397
    %404 = vmatprep.subr.mxu0 0.0
    %405 = vmatpush1.msra.mxu0 0.0
    %406 = vmatprep.subr.mxu0 0.0
    %407 = vmatpush1.msra.mxu0 0.0
    %408 = vmatprep.subr.mxu0 0.0
    %409 = vmatpush1.msra.mxu0 0.0
    %410 = vmatprep.subr.mxu0 0.0
    %411 = vmatpush1.msra.mxu0 0.0
    %412 = vmatprep.subr.mxu0 0.0
    %413 = vmatpush1.msra.mxu0 0.0
    %414 = vmatprep.subr.mxu0 0.0
    %415 = vmatpush1.msra.mxu0 0.0
    %416 = vmatprep.subr.mxu0 0.0
    %417 = vmatpush1.msra.mxu0 0.0
    %418 = vmatprep.subr.mxu0 0.0
    %419 = vmatpush1.msra.mxu0 0.0
    %420 = vmatprep.subr.mxu0 0.0
    %421 = vmatpush1.msra.mxu0 0.0
    %422 = vmatprep.subr.mxu0 0.0
    %423 = vmatpush1.msra.mxu0 0.0
    %424 = vmatprep.subr.mxu0 0.0
    %425 = vmatpush1.msra.mxu0 0.0
    %426 = vmatprep.subr.mxu0 0.0
    %427 = vmatpush1.msra.mxu0 0.0
    %428 = vmatprep.subr.mxu0 0.0
    %429 = vmatpush1.msra.mxu0 0.0
    %430 = vmatprep.subr.mxu0 0.0
    %431 = vmatpush1.msra.mxu0 0.0
    %432 = vmatprep.subr.mxu0 0.0
    %433 = vmatpush1.msra.mxu0 0.0
    %434 = vmatprep.subr.mxu0 0.0
    %435 = vmatpush1.msra.mxu0 0.0
    %436 = vmatprep.subr.mxu0 0.0
    %437 = vmatpush1.msra.mxu0 0.0
    %438 = vmatprep.subr.mxu0 0.0
    %439 = vmatpush1.msra.mxu0 0.0
    %440 = vmatprep.subr.mxu0 0.0
    %441 = vmatpush1.msra.mxu0 0.0
    %442 = vmatprep.subr.mxu0 0.0
    %443 = vmatpush1.msra.mxu0 0.0
    %444 = vmatprep.subr.mxu0 0.0
    %445 = vmatpush1.msra.mxu0 0.0
    %446 = vmatprep.subr.mxu0 0.0
    %447 = vmatpush1.msra.mxu0 0.0
    %448 = vmatprep.subr.mxu0 0.0
    %449 = vmatpush1.msra.mxu0 0.0
    %450 = vmatprep.subr.mxu0 0.0
    %451 = vmatpush1.msra.mxu0 0.0
    %452 = vmatprep.subr.mxu0 0.0
    %453 = vmatpush1.msra.mxu0 0.0
    %454 = vmatprep.subr.mxu0 0.0
    %455 = vmatpush1.msra.mxu0 0.0
    %456 = vmatprep.subr.mxu0 0.0
    %457 = vmatpush1.msra.mxu0 0.0
    %458 = vmatprep.subr.mxu0 0.0
    %459 = vmatpush1.msra.mxu0 0.0
    %460 = vmatprep.subr.mxu0 0.0
    %461 = vmatpush1.msra.mxu0 0.0
    %462 = vmatprep.subr.mxu0 0.0
    %463 = vmatpush1.msra.mxu0 0.0
    %464 = vmatprep.subr.mxu0 0.0
    %465 = vmatpush1.msra.mxu0 0.0
    %466 = vmatprep.mubr.f32.mxu0 0.0
    %467 = vmatmul.mubr.f32.gmra.mrb[0].mxu0 %v400
    %v468 = vpop.f32.mrb[0].mxu0
    %v469 = vadd.f32 0.0, %v468
    %v470 = vpop.f32.mrb[0].mxu0
    %471 = vdwg.mxu0
    %472 = vst.msk [vmem:[#allocation7 + $0x8] sm:$0xff] %vm136, %v469
    // Predicated region
    $region18: #{tpu_custom_call.1} parent=1 // pred_check
      _
    $region19: #{tpu_custom_call.1} parent=1 // pred_check_branch
      %474 = sbr.rel (0) target = $region21
    $region20: #{tpu_custom_call.1} parent=1 // pred_region
      %s476 = ssub.s32 256, 256
      %477 = vsyncadd [#allocation4], %s476
      %s478 = sshll.u32 [#allocation7], 4
      %s479 = int_to_ptr.vmem [resolvable:$true] %s478
      %484 = dma.vmem_to_hbm [thread:$0]  %s479, 256, %s2, [#allocation4], 128, 128, 8
    $region21: #{tpu_custom_call.1} parent=1 // pred_fallthru
      _
    // Predicated region
    $region22: #{tpu_custom_call.1} parent=1 // pred_check
      _
    $region23: #{tpu_custom_call.1} parent=1 // pred_check_branch
      %486 = sbr.rel (0) target = $region25
    $region24: #{tpu_custom_call.1} parent=1 // pred_region
      %487 = dma.done [#allocation4], 256
    $region25: #{tpu_custom_call.1} parent=1 // pred_fallthru
      _
    %488 = vsyncpa [#allocation3], 1
    %489 = vsyncpa [#allocation6], 1
    %490 = vsyncpa [#allocation4], 1

</llo_original>
